<compile_context>
chip_gen: v7x
topology: tpu7x:2x2x1
jax: 0.10.0
libtpu: 0.0.40
codegen_flags: <defaults>
</compile_context>

<pallas_src>
import functools

import jax
import jax.numpy as jnp
from jax import lax
from jax.experimental import pallas as pl
from jax.experimental.pallas import tpu as pltpu


def _match_kernel(inv_na,
                  det_ref, aim_ref,
                  wg_ref, bg_ref,
                  wth_ref, bth_ref,
                  wph_ref, bph_ref,
                  wq_ref, bq_ref,
                  out_ref, t_acc):
    # grid = (B, Nd tiles, Na tiles); Na (last axis) is the sequential reduction.
    ka = pl.program_id(2)

    @pl.when(ka == 0)
    def _():
        t_acc[...] = jnp.zeros_like(t_acc)

    a = aim_ref[0]                                   # (C, tNa), compute dtype
    # 1x1 convs on aim == per-pixel channel matmuls (channel-first: W @ X), f32 acc.
    a_x = jnp.dot(wg_ref[...], a, preferred_element_type=jnp.float32) + bg_ref[...]
    theta = jnp.dot(wth_ref[...], a, preferred_element_type=jnp.float32) + bth_ref[...]
    # T += a_x @ theta^T  (contract over the Na lanes)  -> (inter, inter)
    t_acc[...] += lax.dot_general(a_x, theta, (((1,), (1,)), ((), ())),
                                  preferred_element_type=jnp.float32)

    @pl.when(ka == pl.num_programs(2) - 1)
    def _():
        d = det_ref[0]                               # (C, tNd), compute dtype
        phi = jnp.dot(wph_ref[...], d, preferred_element_type=jnp.float32) + bph_ref[...]
        t = t_acc[...] * inv_na                      # fold 1/Na into the tiny matrix
        # non = T @ phi  -> (inter, tNd)   (never forms the (Nd, Na) matrix)
        non = jnp.dot(t, phi, preferred_element_type=jnp.float32)
        # Q conv with BN(eval) + bias folded:  q = Wq_eff @ non + b_eff  -> (C, tNd)
        q = jnp.dot(wq_ref[...].astype(jnp.float32), non,
                    preferred_element_type=jnp.float32) + bq_ref[...]
        out_ref[0] = (q + d.astype(jnp.float32)).astype(out_ref.dtype)


def _pool2x2(x):
    # 2x2 max pool on NCHW; crop odd dims like nn.MaxPool2d(2) floors them.
    B, C, H, W = x.shape
    x = x[:, :, : (H // 2) * 2, : (W // 2) * 2]
    return x.reshape(B, C, H // 2, 2, W // 2, 2).max(axis=(3, 5))


def _pick_tile(n, target):
    # Largest 128-aligned tile <= target that evenly divides n, else the full dim
    # (keeps the Mosaic (8,128)-or-full-dim block constraint without padding).
    if n <= target:
        return n
    for t in range(target - target % 128, 0, -128):
        if n % t == 0:
            return t
    return n


def match_block_forward(detect, aim, params, *, compute_dtype=None,
                        tile_nd_target=512, tile_na_target=512):
    out_dtype = detect.dtype
    dp = _pool2x2(detect)
    ap = _pool2x2(aim)
    B, C, Hd, Wd = dp.shape
    _, _, Ha, Wa = ap.shape
    Nd, Na = Hd * Wd, Ha * Wa
    inter = params["wg"].shape[0]

    f32 = jnp.float32
    cdt = jnp.dtype(compute_dtype) if compute_dtype is not None else dp.dtype

    # Channel-first, lane-dense (N = H*W on lanes); reshape is layout-free.
    d_cn = dp.reshape(B, C, Nd).astype(cdt)
    a_cn = ap.reshape(B, C, Na).astype(cdt)

    # Fold the Q BatchNorm (eval) affine + conv bias into one weight/bias pair.
    scale = params["q_gamma"].astype(f32) * lax.rsqrt(params["q_var"].astype(f32) + 1e-5)
    wq_eff = (params["wq"].astype(f32) * scale[:, None]).astype(cdt)            # (C, inter)
    b_eff = (scale * (params["bq"][:, 0].astype(f32) - params["q_mean"].astype(f32))
             + params["q_beta"].astype(f32))[:, None]                            # (C, 1)

    wg = params["wg"].astype(cdt)
    wth = params["wth"].astype(cdt)
    wph = params["wph"].astype(cdt)
    bg = params["bg"].astype(f32)
    bth = params["bth"].astype(f32)
    bph = params["bph"].astype(f32)

    tile_nd = _pick_tile(Nd, tile_nd_target)
    tile_na = _pick_tile(Na, tile_na_target)
    n_nd = Nd // tile_nd
    n_na = Na // tile_na

    itemsize = jnp.dtype(cdt).itemsize
    vmem_limit = int(min(96 * 1024 * 1024,
                         max(32 * 1024 * 1024,
                             8 * C * (tile_nd + tile_na) * itemsize)))

    w_spec = lambda shape: pl.BlockSpec(shape, lambda b, i, k: (0, 0))
    kernel = functools.partial(_match_kernel, 1.0 / Na)

    out = pl.pallas_call(
        kernel,
        out_shape=jax.ShapeDtypeStruct((B, C, Nd), out_dtype),
        grid_spec=pltpu.PrefetchScalarGridSpec(
            num_scalar_prefetch=0,
            grid=(B, n_nd, n_na),
            in_specs=[
                pl.BlockSpec((1, C, tile_nd), lambda b, i, k: (b, 0, i)),   # pooled detect
                pl.BlockSpec((1, C, tile_na), lambda b, i, k: (b, 0, k)),   # pooled aim
                w_spec((inter, C)), w_spec((inter, 1)),   # g
                w_spec((inter, C)), w_spec((inter, 1)),   # theta
                w_spec((inter, C)), w_spec((inter, 1)),   # phi
                w_spec((C, inter)), w_spec((C, 1)),       # Q conv (BN + bias folded)
            ],
            out_specs=pl.BlockSpec((1, C, tile_nd), lambda b, i, k: (b, 0, i)),
            scratch_shapes=[pltpu.VMEM((inter, inter), jnp.float32)],
        ),
        compiler_params=pltpu.CompilerParams(
            dimension_semantics=("parallel", "parallel", "arbitrary"),
            vmem_limit_bytes=vmem_limit,
        ),
    )(d_cn, a_cn, wg, bg, wth, bth, wph, bph, wq_eff, b_eff)

    return out.reshape(B, C, Hd, Wd)


def make_params(inplanes, key):
    inter = max(inplanes // 2, 1)
    ks = jax.random.split(key, 12)
    s = 0.1
    f32 = jnp.float32
    return {
        # 1x1 conv weights kept in PyTorch (C_out, C_in) channel-first layout.
        "wg":  s * jax.random.normal(ks[0], (inter, inplanes), f32),
        "bg":  s * jax.random.normal(ks[1], (inter, 1), f32),
        "wth": s * jax.random.normal(ks[2], (inter, inplanes), f32),
        "bth": s * jax.random.normal(ks[3], (inter, 1), f32),
        "wph": s * jax.random.normal(ks[4], (inter, inplanes), f32),
        "bph": s * jax.random.normal(ks[5], (inter, 1), f32),
        "wq":  s * jax.random.normal(ks[6], (inplanes, inter), f32),
        "bq":  s * jax.random.normal(ks[7], (inplanes, 1), f32),
        # PyTorch init zeroes gamma/beta (Q branch == 0).  Use nonzero values
        # here so the test actually exercises the attention / Q-conv path; the
        # kernel implements the general eval-mode affine either way.
        "q_gamma": 1.0 + 0.1 * jax.random.normal(ks[8], (inplanes,), f32),
        "q_beta":  0.1 * jax.random.normal(ks[9], (inplanes,), f32),
        "q_mean":  0.1 * jax.random.normal(ks[10], (inplanes,), f32),
        "q_var":   jnp.abs(1.0 + 0.1 * jax.random.normal(ks[11], (inplanes,), f32)),
    }


def reference_forward(detect, aim, params):
    # Pure-JAX reference mirroring the PyTorch forward (materializes fT).
    dp = _pool2x2(detect).astype(jnp.float32)
    ap = _pool2x2(aim).astype(jnp.float32)
    B, C, Hd, Wd = dp.shape
    d = jnp.transpose(dp.reshape(B, C, -1), (0, 2, 1))        # (B, Nd, C)
    a = jnp.transpose(ap.reshape(B, C, -1), (0, 2, 1))        # (B, Na, C)
    a_x = a @ params["wg"].T + params["bg"].T                 # (B, Na, inter)
    theta = a @ params["wth"].T + params["bth"].T             # (B, Na, inter)
    phi = d @ params["wph"].T + params["bph"].T               # (B, Nd, inter)
    f = jnp.einsum("bni,bmi->bnm", theta, phi)                # (B, Na, Nd)
    fT = jnp.transpose(f, (0, 2, 1)) / f.shape[1]             # (B, Nd, Na) / Na
    non = fT @ a_x                                            # (B, Nd, inter)
    q = non @ params["wq"].T + params["bq"].T                 # (B, Nd, C)
    inv = jax.lax.rsqrt(params["q_var"] + 1e-5)
    q = (q - params["q_mean"]) * inv * params["q_gamma"] + params["q_beta"]
    out = q + d
    return jnp.transpose(out, (0, 2, 1)).reshape(B, C, Hd, Wd)


if __name__ == "__main__":
    key = jax.random.PRNGKey(0)
    k_det, k_aim, k_par = jax.random.split(key, 3)

    B, C, H, W = 2, 4, 16, 16          # inplanes=4 -> inter_channels=2
    detect = jax.random.normal(k_det, (B, C, H, W), jnp.float32)
    aim = jax.random.normal(k_aim, (B, C, H, W), jnp.float32)
    params = make_params(C, k_par)

    ref = reference_forward(detect, aim, params)

    # f32 end-to-end
    out = jax.block_until_ready(match_block_forward(detect, aim, params))
    assert out.shape == (B, C, H // 2, W // 2)
    assert jnp.allclose(out, ref, atol=1e-4, rtol=1e-4), "f32 mismatch vs JAX reference"

    # bf16 matmul operands, f32 accumulation / elementwise (looser tolerance)
    out_bf16 = jax.block_until_ready(
        match_block_forward(detect, aim, params, compute_dtype=jnp.bfloat16))
    assert out_bf16.shape == (B, C, H // 2, W // 2)
    assert jnp.allclose(out_bf16.astype(jnp.float32), ref, atol=6e-2, rtol=6e-2), \
        "bf16 mismatch vs JAX reference"

    print("KERNEL_OK")
</pallas_src>

<mosaic_0001>
module attributes {stable_mosaic.version = 11 : i64} {
  func.func @_match_kernel(%arg0: i32, %arg1: i32, %arg2: i32, %arg3: memref<1x4x64xf32, #tpu.memory_space<vmem>>, %arg4: memref<1x4x64xf32, #tpu.memory_space<vmem>>, %arg5: memref<2x4xf32, #tpu.memory_space<vmem>>, %arg6: memref<2x1xf32, #tpu.memory_space<vmem>>, %arg7: memref<2x4xf32, #tpu.memory_space<vmem>>, %arg8: memref<2x1xf32, #tpu.memory_space<vmem>>, %arg9: memref<2x4xf32, #tpu.memory_space<vmem>>, %arg10: memref<2x1xf32, #tpu.memory_space<vmem>>, %arg11: memref<4x2xf32, #tpu.memory_space<vmem>>, %arg12: memref<4x1xf32, #tpu.memory_space<vmem>>, %arg13: memref<1x4x64xf32, #tpu.memory_space<vmem>>, %arg14: memref<2x2xf32, #tpu.memory_space<vmem>>) attributes {dimension_semantics = [#tpu.dimension_semantics<parallel>, #tpu.dimension_semantics<parallel>, #tpu.dimension_semantics<arbitrary>], iteration_bounds = array<i64: 2, 1, 1>, scalar_prefetch = 0 : i64, scratch_operands = 1 : i64, tpu.core_type = #tpu.core_type<tc>, window_params = [{transform_indices = @transform_0, window_bounds = array<i64: 1, 4, 64>}, {transform_indices = @transform_1, window_bounds = array<i64: 1, 4, 64>}, {pipeline_mode = #tpu.pipeline_mode<synchronous>, transform_indices = @transform_2, window_bounds = array<i64: 2, 4>}, {pipeline_mode = #tpu.pipeline_mode<synchronous>, transform_indices = @transform_3, window_bounds = array<i64: 2, 1>}, {pipeline_mode = #tpu.pipeline_mode<synchronous>, transform_indices = @transform_4, window_bounds = array<i64: 2, 4>}, {pipeline_mode = #tpu.pipeline_mode<synchronous>, transform_indices = @transform_5, window_bounds = array<i64: 2, 1>}, {pipeline_mode = #tpu.pipeline_mode<synchronous>, transform_indices = @transform_6, window_bounds = array<i64: 2, 4>}, {pipeline_mode = #tpu.pipeline_mode<synchronous>, transform_indices = @transform_7, window_bounds = array<i64: 2, 1>}, {pipeline_mode = #tpu.pipeline_mode<synchronous>, transform_indices = @transform_8, window_bounds = array<i64: 4, 2>}, {pipeline_mode = #tpu.pipeline_mode<synchronous>, transform_indices = @transform_9, window_bounds = array<i64: 4, 1>}, {transform_indices = @transform_10, window_bounds = array<i64: 1, 4, 64>}]} {
    %c0_i32 = arith.constant 0 : i32
    %0 = arith.cmpi eq, %arg2, %c0_i32 : i32
    %1 = arith.extui %0 : i1 to i32
    %c0_i32_0 = arith.constant 0 : i32
    %2 = arith.cmpi ne, %1, %c0_i32_0 : i32
    scf.if %2 {
      %cst_19 = arith.constant 0.000000e+00 : f32
      %22 = vector.broadcast %cst_19 : f32 to vector<2x2xf32>
      %c0_20 = arith.constant 0 : index
      %c0_21 = arith.constant 0 : index
      %23 = vector.load %arg14[%c0_20, %c0_21] : memref<2x2xf32, #tpu.memory_space<vmem>>, vector<2x2xf32>
      tpu.vector_store %arg14[%c0_20, %c0_21], %22 {strides = array<i32>} : memref<2x2xf32, #tpu.memory_space<vmem>>, vector<2x2xf32>,
    } else {
    }
    %c0 = arith.constant 0 : index
    %c0_1 = arith.constant 0 : index
    %c0_2 = arith.constant 0 : index
    %3 = vector.load %arg4[%c0, %c0_1, %c0_2] : memref<1x4x64xf32, #tpu.memory_space<vmem>>, vector<1x4x64xf32>
    %4 = vector.shape_cast %3 : vector<1x4x64xf32> to vector<4x64xf32>
    %c0_3 = arith.constant 0 : index
    %c0_4 = arith.constant 0 : index
    %5 = vector.load %arg5[%c0_3, %c0_4] : memref<2x4xf32, #tpu.memory_space<vmem>>, vector<2x4xf32>
    %cst = arith.constant dense<0.000000e+00> : vector<2x64xf32>
    %6 = tpu.matmul %5, %4, %cst {dimension_numbers = #tpu.dot_dimension_numbers<[1], [0], [0], [1], [0, 0, 1, 1], [], []>} : vector<2x4xf32>, vector<4x64xf32>, vector<2x64xf32> -> vector<2x64xf32>
    %c0_5 = arith.constant 0 : index
    %c0_6 = arith.constant 0 : index
    %7 = vector.load %arg6[%c0_5, %c0_6] : memref<2x1xf32, #tpu.memory_space<vmem>>, vector<2x1xf32>
    %8 = vector.broadcast %7 : vector<2x1xf32> to vector<2x64xf32>
    %9 = arith.addf %6, %8 : vector<2x64xf32>
    %c0_7 = arith.constant 0 : index
    %c0_8 = arith.constant 0 : index
    %10 = vector.load %arg7[%c0_7, %c0_8] : memref<2x4xf32, #tpu.memory_space<vmem>>, vector<2x4xf32>
    %cst_9 = arith.constant dense<0.000000e+00> : vector<2x64xf32>
    %11 = tpu.matmul %10, %4, %cst_9 {dimension_numbers = #tpu.dot_dimension_numbers<[1], [0], [0], [1], [0, 0, 1, 1], [], []>} : vector<2x4xf32>, vector<4x64xf32>, vector<2x64xf32> -> vector<2x64xf32>
    %c0_10 = arith.constant 0 : index
    %c0_11 = arith.constant 0 : index
    %12 = vector.load %arg8[%c0_10, %c0_11] : memref<2x1xf32, #tpu.memory_space<vmem>>, vector<2x1xf32>
    %13 = vector.broadcast %12 : vector<2x1xf32> to vector<2x64xf32>
    %14 = arith.addf %11, %13 : vector<2x64xf32>
    %c0_12 = arith.constant 0 : index
    %c0_13 = arith.constant 0 : index
    %15 = vector.load %arg14[%c0_12, %c0_13] : memref<2x2xf32, #tpu.memory_space<vmem>>, vector<2x2xf32>
    %cst_14 = arith.constant dense<0.000000e+00> : vector<2x2xf32>
    %16 = tpu.matmul %9, %14, %cst_14 {dimension_numbers = #tpu.dot_dimension_numbers<[1], [1], [0], [0], [0, 0, 1, 0], [], []>} : vector<2x64xf32>, vector<2x64xf32>, vector<2x2xf32> -> vector<2x2xf32>
    %17 = arith.addf %15, %16 : vector<2x2xf32>
    %c0_15 = arith.constant 0 : index
    %c0_16 = arith.constant 0 : index
    %18 = vector.load %arg14[%c0_15, %c0_16] : memref<2x2xf32, #tpu.memory_space<vmem>>, vector<2x2xf32>
    tpu.vector_store %arg14[%c0_15, %c0_16], %17 {strides = array<i32>} : memref<2x2xf32, #tpu.memory_space<vmem>>, vector<2x2xf32>,
    %c0_i32_17 = arith.constant 0 : i32
    %19 = arith.cmpi eq, %arg2, %c0_i32_17 : i32
    %20 = arith.extui %19 : i1 to i32
    %c0_i32_18 = arith.constant 0 : i32
    %21 = arith.cmpi ne, %20, %c0_i32_18 : i32
    scf.if %21 {
      %c0_19 = arith.constant 0 : index
      %c0_20 = arith.constant 0 : index
      %c0_21 = arith.constant 0 : index
      %22 = vector.load %arg3[%c0_19, %c0_20, %c0_21] : memref<1x4x64xf32, #tpu.memory_space<vmem>>, vector<1x4x64xf32>
      %23 = vector.shape_cast %22 : vector<1x4x64xf32> to vector<4x64xf32>
      %c0_22 = arith.constant 0 : index
      %c0_23 = arith.constant 0 : index
      %24 = vector.load %arg9[%c0_22, %c0_23] : memref<2x4xf32, #tpu.memory_space<vmem>>, vector<2x4xf32>
      %cst_24 = arith.constant dense<0.000000e+00> : vector<2x64xf32>
      %25 = tpu.matmul %24, %23, %cst_24 {dimension_numbers = #tpu.dot_dimension_numbers<[1], [0], [0], [1], [0, 0, 1, 1], [], []>} : vector<2x4xf32>, vector<4x64xf32>, vector<2x64xf32> -> vector<2x64xf32>
      %c0_25 = arith.constant 0 : index
      %c0_26 = arith.constant 0 : index
      %26 = vector.load %arg10[%c0_25, %c0_26] : memref<2x1xf32, #tpu.memory_space<vmem>>, vector<2x1xf32>
      %27 = vector.broadcast %26 : vector<2x1xf32> to vector<2x64xf32>
      %28 = arith.addf %25, %27 : vector<2x64xf32>
      %c0_27 = arith.constant 0 : index
      %c0_28 = arith.constant 0 : index
      %29 = vector.load %arg14[%c0_27, %c0_28] : memref<2x2xf32, #tpu.memory_space<vmem>>, vector<2x2xf32>
      %cst_29 = arith.constant 1.562500e-02 : f32
      %30 = vector.broadcast %cst_29 : f32 to vector<2x2xf32>
      %31 = arith.mulf %29, %30 : vector<2x2xf32>
      %cst_30 = arith.constant dense<0.000000e+00> : vector<2x64xf32>
      %32 = tpu.matmul %31, %28, %cst_30 {dimension_numbers = #tpu.dot_dimension_numbers<[1], [0], [0], [1], [0, 0, 1, 1], [], []>} : vector<2x2xf32>, vector<2x64xf32>, vector<2x64xf32> -> vector<2x64xf32>
      %c0_31 = arith.constant 0 : index
      %c0_32 = arith.constant 0 : index
      %33 = vector.load %arg11[%c0_31, %c0_32] : memref<4x2xf32, #tpu.memory_space<vmem>>, vector<4x2xf32>
      %cst_33 = arith.constant dense<0.000000e+00> : vector<4x64xf32>
      %34 = tpu.matmul %33, %32, %cst_33 {dimension_numbers = #tpu.dot_dimension_numbers<[1], [0], [0], [1], [0, 0, 1, 1], [], []>} : vector<4x2xf32>, vector<2x64xf32>, vector<4x64xf32> -> vector<4x64xf32>
      %c0_34 = arith.constant 0 : index
      %c0_35 = arith.constant 0 : index
      %35 = vector.load %arg12[%c0_34, %c0_35] : memref<4x1xf32, #tpu.memory_space<vmem>>, vector<4x1xf32>
      %36 = vector.broadcast %35 : vector<4x1xf32> to vector<4x64xf32>
      %37 = arith.addf %34, %36 : vector<4x64xf32>
      %38 = arith.addf %37, %23 : vector<4x64xf32>
      %c0_36 = arith.constant 0 : index
      %c0_37 = arith.constant 0 : index
      %c0_38 = arith.constant 0 : index
      %39 = vector.load %arg13[%c0_36, %c0_37, %c0_38] : memref<1x4x64xf32, #tpu.memory_space<vmem>>, vector<1x4x64xf32>
      %40 = vector.shape_cast %39 : vector<1x4x64xf32> to vector<4x64xf32>
      %41 = vector.shape_cast %38 : vector<4x64xf32> to vector<1x4x64xf32>
      tpu.vector_store %arg13[%c0_36, %c0_37, %c0_38], %41 {strides = array<i32>} : memref<1x4x64xf32, #tpu.memory_space<vmem>>, vector<1x4x64xf32>,
    } else {
    }
    return
  }
  func.func @transform_0(%arg0: i32, %arg1: i32, %arg2: i32) -> (i32, i32, i32) {
    %c0_i32 = arith.constant 0 : i32
    %c0_i32_0 = arith.constant 0 : i32
    return %arg0, %c0_i32, %arg1 : i32, i32, i32
  }
  func.func @transform_1(%arg0: i32, %arg1: i32, %arg2: i32) -> (i32, i32, i32) {
    %c0_i32 = arith.constant 0 : i32
    %c0_i32_0 = arith.constant 0 : i32
    return %arg0, %c0_i32, %arg2 : i32, i32, i32
  }
  func.func @transform_2(%arg0: i32, %arg1: i32, %arg2: i32) -> (i32, i32) {
    %c0_i32 = arith.constant 0 : i32
    %c0_i32_0 = arith.constant 0 : i32
    %c0_i32_1 = arith.constant 0 : i32
    return %c0_i32, %c0_i32_0 : i32, i32
  }
  func.func @transform_3(%arg0: i32, %arg1: i32, %arg2: i32) -> (i32, i32) {
    %c0_i32 = arith.constant 0 : i32
    %c0_i32_0 = arith.constant 0 : i32
    %c0_i32_1 = arith.constant 0 : i32
    return %c0_i32, %c0_i32_0 : i32, i32
  }
  func.func @transform_4(%arg0: i32, %arg1: i32, %arg2: i32) -> (i32, i32) {
    %c0_i32 = arith.constant 0 : i32
    %c0_i32_0 = arith.constant 0 : i32
    %c0_i32_1 = arith.constant 0 : i32
    return %c0_i32, %c0_i32_0 : i32, i32
  }
  func.func @transform_5(%arg0: i32, %arg1: i32, %arg2: i32) -> (i32, i32) {
    %c0_i32 = arith.constant 0 : i32
    %c0_i32_0 = arith.constant 0 : i32
    %c0_i32_1 = arith.constant 0 : i32
    return %c0_i32, %c0_i32_0 : i32, i32
  }
  func.func @transform_6(%arg0: i32, %arg1: i32, %arg2: i32) -> (i32, i32) {
    %c0_i32 = arith.constant 0 : i32
    %c0_i32_0 = arith.constant 0 : i32
    %c0_i32_1 = arith.constant 0 : i32
    return %c0_i32, %c0_i32_0 : i32, i32
  }
  func.func @transform_7(%arg0: i32, %arg1: i32, %arg2: i32) -> (i32, i32) {
    %c0_i32 = arith.constant 0 : i32
    %c0_i32_0 = arith.constant 0 : i32
    %c0_i32_1 = arith.constant 0 : i32
    return %c0_i32, %c0_i32_0 : i32, i32
  }
  func.func @transform_8(%arg0: i32, %arg1: i32, %arg2: i32) -> (i32, i32) {
    %c0_i32 = arith.constant 0 : i32
    %c0_i32_0 = arith.constant 0 : i32
    %c0_i32_1 = arith.constant 0 : i32
    return %c0_i32, %c0_i32_0 : i32, i32
  }
  func.func @transform_9(%arg0: i32, %arg1: i32, %arg2: i32) -> (i32, i32) {
    %c0_i32 = arith.constant 0 : i32
    %c0_i32_0 = arith.constant 0 : i32
    %c0_i32_1 = arith.constant 0 : i32
    return %c0_i32, %c0_i32_0 : i32, i32
  }
  func.func @transform_10(%arg0: i32, %arg1: i32, %arg2: i32) -> (i32, i32, i32) {
    %c0_i32 = arith.constant 0 : i32
    %c0_i32_0 = arith.constant 0 : i32
    return %arg0, %c0_i32, %arg1 : i32, i32, i32
  }
}

</mosaic_0001>

<llo_original>
// kernel: tpu_custom_call.1
$region0: #{tpu_custom_call.1}
  #allocation0 [shape = 'u32[]', space=smem, size = 0x4, offset = 0x4, fixed_abs, tag = 'smem constant byte address 0x4 - core index']
  #allocation1 [shape = 'u32[144,128]{1,0:T(1,128)}', space=vmem, size = 0x12000, scoped, tag = 'internal scratch']
  #allocation2 [shape = 'f32[2,2]{1,0:T(2,128)}', space=vmem, size = 0x400, scoped, tag = 'scratch operand']
  %s0 = inlined_call_operand.vmem [shape: f32[2,4,64], index: 0, kind: input, shape index: {}]
  %s1 = inlined_call_operand.vmem [shape: f32[2,4,64], index: 1, kind: input, shape index: {}]
  %s2 = inlined_call_operand.vmem [shape: f32[2,4], index: 2, kind: input, shape index: {}]
  %s3 = inlined_call_operand.vmem [shape: f32[2,1], index: 3, kind: input, shape index: {}]
  %s4 = inlined_call_operand.vmem [shape: f32[2,4], index: 4, kind: input, shape index: {}]
  %s5 = inlined_call_operand.vmem [shape: f32[2,1], index: 5, kind: input, shape index: {}]
  %s6 = inlined_call_operand.vmem [shape: f32[2,4], index: 6, kind: input, shape index: {}]
  %s7 = inlined_call_operand.vmem [shape: f32[2,1], index: 7, kind: input, shape index: {}]
  %s8 = inlined_call_operand.vmem [shape: f32[4,2], index: 8, kind: input, shape index: {}]
  %s9 = inlined_call_operand.vmem [shape: f32[4,1], index: 9, kind: input, shape index: {}]
  %s10 = inlined_call_operand.hbm [shape: f32[2,4,64], index: 10, kind: output, shape index: {}]
  %s11 = sld [smem:[#allocation0]]
  $region81: #{tpu_custom_call.1} parent=0
    _
  %s13 = ssub.s32 1, %s11
  %s14 = scalar_select 0, %s13, %s11
  $region1: #{tpu_custom_call.1} parent=0
    #allocation3 [shape = 'u8[4096]{0}', space=vmem, size = 0x1000, scoped, tag = 'output window, operand 0']
    #allocation4 [shape = 's32[2]{0}', space=sflag, size = 0x8, scoped, tag = 'scoped memory for tpu_custom_call.1']
    %15 = vsyncpa [#allocation4], 0
    %s16 = scalar_lea.sflag [#allocation4], 1
    %17 = vsyncpa %s16, 0
    loop: start=0, step=1, limit=4
    $region2: #{tpu_custom_call.1} parent=1 // loop_pre_header
      _
    $region3: #{tpu_custom_call.1} parent=1 // loop_header
      %s19 = sphi 0, %s23
      %p20 = scmp.ge.s32.totalorder %s19, 4
      %s26 = sphi 0, %s45
      %s27 = sphi 0, %s41
      %s28 = sphi 0, %s37
      %s29 = sphi 0, %s26
      %s30 = sphi 0, %s27
      %s31 = sphi 0, %s28
      %s32 = sphi 0, %s29
      %s33 = sphi 0, %s30
      %s34 = sphi 0, %s31
      %s50 = sphi 0, %s52
      %s53 = sphi 0, %s50
      %s54 = sphi 0, %s53
      %s70 = sphi 0, %s54
      %s78 = sphi 0, %s80
      %s81 = sphi 0, %s78
      %s82 = sphi 0, %s81
      %s98 = sphi 0, %s82
      %s102 = sphi 0, %s102
      %s104 = sphi 0, %s102
      %s105 = sphi 0, %s104
      %s119 = sphi 0, %s105
      %s123 = sphi 0, %s123
      %s125 = sphi 0, %s123
      %s126 = sphi 0, %s125
      %s140 = sphi 0, %s126
      %s144 = sphi 0, %s144
      %s146 = sphi 0, %s144
      %s147 = sphi 0, %s146
      %s161 = sphi 0, %s147
      %s165 = sphi 0, %s165
      %s167 = sphi 0, %s165
      %s168 = sphi 0, %s167
      %s182 = sphi 0, %s168
      %s186 = sphi 0, %s186
      %s188 = sphi 0, %s186
      %s189 = sphi 0, %s188
      %s203 = sphi 0, %s189
      %s207 = sphi 0, %s207
      %s209 = sphi 0, %s207
      %s210 = sphi 0, %s209
      %s224 = sphi 0, %s210
      %s228 = sphi 0, %s228
      %s230 = sphi 0, %s228
      %s231 = sphi 0, %s230
      %s245 = sphi 0, %s231
      %s249 = sphi 0, %s249
      %s251 = sphi 0, %s249
      %s252 = sphi 0, %s251
      %s266 = sphi 0, %s252
      %s274 = sphi 0, %s276
      %s277 = sphi 0, %s274
      %s278 = sphi 0, %s277
      %s294 = sphi 0, %s278
    $region4: #{tpu_custom_call.1} parent=1 // loop_header_branch
      %22 = sbr.rel (%p20) target = $region8
    $region5: #{tpu_custom_call.1} parent=1 // loop_body
      %s24 = ssub.s32 %s19, 1
      %s25 = ssub.s32 %s19, 2
      %s35 = sadd.s32 1, %s28
      %p36 = scmp.ge.s32.totalorder %s35, 1
      %s37 = scalar_select %p36, 0, %s35
      %s38 = sadd.s32 1, %s27
      %s39 = scalar_select %p36, %s38, %s27
      %p40 = scmp.ge.s32.totalorder %s39, 1
      %s41 = scalar_select %p40, 0, %s39
      %s42 = sadd.s32 1, %s26
      %s43 = scalar_select %p40, %s42, %s26
      %p44 = scmp.ge.s32.totalorder %s43, 2
      %s45 = scalar_select %p44, 0, %s43
      %s46 = ssub.s32 %s26, %s45
      %s47 = ssub.s32 %s27, %s41
      %s48 = sor.u32 %s46, %s47
      %p49 = scmp.eq.s32.totalorder %s48, 0
      %s51 = sadd.s32 %s50, 1
      %s52 = scalar_select %p49, %s50, %s51
      %p55 = pneg %p49
      %p56 = scmp.eq.s32.totalorder %s19, 1
      %p57 = por %p55, %p56
      %p58 = scmp.ne.s32.totalorder %s50, %s53
      %p59 = scmp.eq.s32.totalorder %s19, 0
      %p60 = por %p58, %p59
      %p61 = scmp.ne.s32.totalorder %s50, %s53
      %p62 = scmp.eq.s32.totalorder %s24, 1
      %p63 = por %p61, %p62
      %p64 = scmp.ne.s32.totalorder %s53, %s54
      %p65 = scmp.eq.s32.totalorder %s24, 0
      %p66 = por %p64, %p65
      %p67 = scmp.ne.s32.totalorder %s53, %s54
      %p68 = scmp.eq.s32.totalorder %s25, 1
      %p69 = por %p67, %p68
      %p71 = scmp.ne.s32.totalorder %s54, %s70
      %p72 = scmp.eq.s32.totalorder %s25, 0
      %p73 = por %p71, %p72
      %s74 = ssub.s32 %s26, %s45
      %s75 = ssub.s32 %s28, %s37
      %s76 = sor.u32 %s74, %s75
      %p77 = scmp.eq.s32.totalorder %s76, 0
      %s79 = sadd.s32 %s78, 1
      %s80 = scalar_select %p77, %s78, %s79
      %p83 = pneg %p77
      %p84 = scmp.eq.s32.totalorder %s19, 1
      %p85 = por %p83, %p84
      %p86 = scmp.ne.s32.totalorder %s78, %s81
      %p87 = scmp.eq.s32.totalorder %s19, 0
      %p88 = por %p86, %p87
      %p89 = scmp.ne.s32.totalorder %s78, %s81
      %p90 = scmp.eq.s32.totalorder %s24, 1
      %p91 = por %p89, %p90
      %p92 = scmp.ne.s32.totalorder %s81, %s82
      %p93 = scmp.eq.s32.totalorder %s24, 0
      %p94 = por %p92, %p93
      %p95 = scmp.ne.s32.totalorder %s81, %s82
      %p96 = scmp.eq.s32.totalorder %s25, 1
      %p97 = por %p95, %p96
      %p99 = scmp.ne.s32.totalorder %s82, %s98
      %p100 = scmp.eq.s32.totalorder %s25, 0
      %p101 = por %p99, %p100
      %s103 = sadd.s32 %s102, 1
      %p106 = scmp.eq.s32.totalorder %s19, 1
      %p107 = scmp.ne.s32.totalorder %s102, %s104
      %p108 = scmp.eq.s32.totalorder %s19, 0
      %p109 = por %p107, %p108
      %p110 = scmp.ne.s32.totalorder %s102, %s104
      %p111 = scmp.eq.s32.totalorder %s24, 1
      %p112 = por %p110, %p111
      %p113 = scmp.ne.s32.totalorder %s104, %s105
      %p114 = scmp.eq.s32.totalorder %s24, 0
      %p115 = por %p113, %p114
      %p116 = scmp.ne.s32.totalorder %s104, %s105
      %p117 = scmp.eq.s32.totalorder %s25, 1
      %p118 = por %p116, %p117
      %p120 = scmp.ne.s32.totalorder %s105, %s119
      %p121 = scmp.eq.s32.totalorder %s25, 0
      %p122 = por %p120, %p121
      %s124 = sadd.s32 %s123, 1
      %p127 = scmp.eq.s32.totalorder %s19, 1
      %p128 = scmp.ne.s32.totalorder %s123, %s125
      %p129 = scmp.eq.s32.totalorder %s19, 0
      %p130 = por %p128, %p129
      %p131 = scmp.ne.s32.totalorder %s123, %s125
      %p132 = scmp.eq.s32.totalorder %s24, 1
      %p133 = por %p131, %p132
      %p134 = scmp.ne.s32.totalorder %s125, %s126
      %p135 = scmp.eq.s32.totalorder %s24, 0
      %p136 = por %p134, %p135
      %p137 = scmp.ne.s32.totalorder %s125, %s126
      %p138 = scmp.eq.s32.totalorder %s25, 1
      %p139 = por %p137, %p138
      %p141 = scmp.ne.s32.totalorder %s126, %s140
      %p142 = scmp.eq.s32.totalorder %s25, 0
      %p143 = por %p141, %p142
      %s145 = sadd.s32 %s144, 1
      %p148 = scmp.eq.s32.totalorder %s19, 1
      %p149 = scmp.ne.s32.totalorder %s144, %s146
      %p150 = scmp.eq.s32.totalorder %s19, 0
      %p151 = por %p149, %p150
      %p152 = scmp.ne.s32.totalorder %s144, %s146
      %p153 = scmp.eq.s32.totalorder %s24, 1
      %p154 = por %p152, %p153
      %p155 = scmp.ne.s32.totalorder %s146, %s147
      %p156 = scmp.eq.s32.totalorder %s24, 0
      %p157 = por %p155, %p156
      %p158 = scmp.ne.s32.totalorder %s146, %s147
      %p159 = scmp.eq.s32.totalorder %s25, 1
      %p160 = por %p158, %p159
      %p162 = scmp.ne.s32.totalorder %s147, %s161
      %p163 = scmp.eq.s32.totalorder %s25, 0
      %p164 = por %p162, %p163
      %s166 = sadd.s32 %s165, 1
      %p169 = scmp.eq.s32.totalorder %s19, 1
      %p170 = scmp.ne.s32.totalorder %s165, %s167
      %p171 = scmp.eq.s32.totalorder %s19, 0
      %p172 = por %p170, %p171
      %p173 = scmp.ne.s32.totalorder %s165, %s167
      %p174 = scmp.eq.s32.totalorder %s24, 1
      %p175 = por %p173, %p174
      %p176 = scmp.ne.s32.totalorder %s167, %s168
      %p177 = scmp.eq.s32.totalorder %s24, 0
      %p178 = por %p176, %p177
      %p179 = scmp.ne.s32.totalorder %s167, %s168
      %p180 = scmp.eq.s32.totalorder %s25, 1
      %p181 = por %p179, %p180
      %p183 = scmp.ne.s32.totalorder %s168, %s182
      %p184 = scmp.eq.s32.totalorder %s25, 0
      %p185 = por %p183, %p184
      %s187 = sadd.s32 %s186, 1
      %p190 = scmp.eq.s32.totalorder %s19, 1
      %p191 = scmp.ne.s32.totalorder %s186, %s188
      %p192 = scmp.eq.s32.totalorder %s19, 0
      %p193 = por %p191, %p192
      %p194 = scmp.ne.s32.totalorder %s186, %s188
      %p195 = scmp.eq.s32.totalorder %s24, 1
      %p196 = por %p194, %p195
      %p197 = scmp.ne.s32.totalorder %s188, %s189
      %p198 = scmp.eq.s32.totalorder %s24, 0
      %p199 = por %p197, %p198
      %p200 = scmp.ne.s32.totalorder %s188, %s189
      %p201 = scmp.eq.s32.totalorder %s25, 1
      %p202 = por %p200, %p201
      %p204 = scmp.ne.s32.totalorder %s189, %s203
      %p205 = scmp.eq.s32.totalorder %s25, 0
      %p206 = por %p204, %p205
      %s208 = sadd.s32 %s207, 1
      %p211 = scmp.eq.s32.totalorder %s19, 1
      %p212 = scmp.ne.s32.totalorder %s207, %s209
      %p213 = scmp.eq.s32.totalorder %s19, 0
      %p214 = por %p212, %p213
      %p215 = scmp.ne.s32.totalorder %s207, %s209
      %p216 = scmp.eq.s32.totalorder %s24, 1
      %p217 = por %p215, %p216
      %p218 = scmp.ne.s32.totalorder %s209, %s210
      %p219 = scmp.eq.s32.totalorder %s24, 0
      %p220 = por %p218, %p219
      %p221 = scmp.ne.s32.totalorder %s209, %s210
      %p222 = scmp.eq.s32.totalorder %s25, 1
      %p223 = por %p221, %p222
      %p225 = scmp.ne.s32.totalorder %s210, %s224
      %p226 = scmp.eq.s32.totalorder %s25, 0
      %p227 = por %p225, %p226
      %s229 = sadd.s32 %s228, 1
      %p232 = scmp.eq.s32.totalorder %s19, 1
      %p233 = scmp.ne.s32.totalorder %s228, %s230
      %p234 = scmp.eq.s32.totalorder %s19, 0
      %p235 = por %p233, %p234
      %p236 = scmp.ne.s32.totalorder %s228, %s230
      %p237 = scmp.eq.s32.totalorder %s24, 1
      %p238 = por %p236, %p237
      %p239 = scmp.ne.s32.totalorder %s230, %s231
      %p240 = scmp.eq.s32.totalorder %s24, 0
      %p241 = por %p239, %p240
      %p242 = scmp.ne.s32.totalorder %s230, %s231
      %p243 = scmp.eq.s32.totalorder %s25, 1
      %p244 = por %p242, %p243
      %p246 = scmp.ne.s32.totalorder %s231, %s245
      %p247 = scmp.eq.s32.totalorder %s25, 0
      %p248 = por %p246, %p247
      %s250 = sadd.s32 %s249, 1
      %p253 = scmp.eq.s32.totalorder %s19, 1
      %p254 = scmp.ne.s32.totalorder %s249, %s251
      %p255 = scmp.eq.s32.totalorder %s19, 0
      %p256 = por %p254, %p255
      %p257 = scmp.ne.s32.totalorder %s249, %s251
      %p258 = scmp.eq.s32.totalorder %s24, 1
      %p259 = por %p257, %p258
      %p260 = scmp.ne.s32.totalorder %s251, %s252
      %p261 = scmp.eq.s32.totalorder %s24, 0
      %p262 = por %p260, %p261
      %p263 = scmp.ne.s32.totalorder %s251, %s252
      %p264 = scmp.eq.s32.totalorder %s25, 1
      %p265 = por %p263, %p264
      %p267 = scmp.ne.s32.totalorder %s252, %s266
      %p268 = scmp.eq.s32.totalorder %s25, 0
      %p269 = por %p267, %p268
      %s270 = ssub.s32 %s26, %s45
      %s271 = ssub.s32 %s27, %s41
      %s272 = sor.u32 %s270, %s271
      %p273 = scmp.eq.s32.totalorder %s272, 0
      %s275 = sadd.s32 %s274, 1
      %s276 = scalar_select %p273, %s274, %s275
      %p279 = pneg %p273
      %p280 = scmp.eq.s32.totalorder %s19, 1
      %p281 = por %p279, %p280
      %p282 = scmp.ne.s32.totalorder %s274, %s277
      %p283 = scmp.eq.s32.totalorder %s19, 0
      %p284 = por %p282, %p283
      %p285 = scmp.ne.s32.totalorder %s274, %s277
      %p286 = scmp.eq.s32.totalorder %s24, 1
      %p287 = por %p285, %p286
      %p288 = scmp.ne.s32.totalorder %s277, %s278
      %p289 = scmp.eq.s32.totalorder %s24, 0
      %p290 = por %p288, %p289
      %p291 = scmp.ne.s32.totalorder %s277, %s278
      %p292 = scmp.eq.s32.totalorder %s25, 1
      %p293 = por %p291, %p292
      %p295 = scmp.ne.s32.totalorder %s278, %s294
      %p296 = scmp.eq.s32.totalorder %s25, 0
      %p297 = por %p295, %p296
      %p298 = scmp.le.s32.totalorder 1, %s19
      %p299 = scmp.lt.s32.totalorder %s19, 3
      %p300 = pnand %p298, %p299
      %p301 = pneg %p300
      // Predicated region
      $region9: #{tpu_custom_call.1} parent=5 // pred_check
        _
      $region10: #{tpu_custom_call.1} parent=5 // pred_check_branch
        %303 = sbr.rel (%p300) target = $region12
      $region11: #{tpu_custom_call.1} parent=5 // pred_region
        %s304 = ssub.s32 %s19, 1
        // Predicated region
        $region13: #{tpu_custom_call.1} parent=11 // pred_check
          %p305 = pneg %p115
        $region14: #{tpu_custom_call.1} parent=11 // pred_check_branch
          %307 = sbr.rel (%p305) target = $region16
        $region15: #{tpu_custom_call.1} parent=11 // pred_region
          _
        $region16: #{tpu_custom_call.1} parent=11 // pred_fallthru
          _
        // Predicated region
        $region17: #{tpu_custom_call.1} parent=11 // pred_check
          %p308 = pneg %p136
        $region18: #{tpu_custom_call.1} parent=11 // pred_check_branch
          %310 = sbr.rel (%p308) target = $region20
        $region19: #{tpu_custom_call.1} parent=11 // pred_region
          _
        $region20: #{tpu_custom_call.1} parent=11 // pred_fallthru
          _
        // Predicated region
        $region21: #{tpu_custom_call.1} parent=11 // pred_check
          %p311 = pneg %p157
        $region22: #{tpu_custom_call.1} parent=11 // pred_check_branch
          %313 = sbr.rel (%p311) target = $region24
        $region23: #{tpu_custom_call.1} parent=11 // pred_region
          _
        $region24: #{tpu_custom_call.1} parent=11 // pred_fallthru
          _
        // Predicated region
        $region25: #{tpu_custom_call.1} parent=11 // pred_check
          %p314 = pneg %p178
        $region26: #{tpu_custom_call.1} parent=11 // pred_check_branch
          %316 = sbr.rel (%p314) target = $region28
        $region27: #{tpu_custom_call.1} parent=11 // pred_region
          _
        $region28: #{tpu_custom_call.1} parent=11 // pred_fallthru
          _
        // Predicated region
        $region29: #{tpu_custom_call.1} parent=11 // pred_check
          %p317 = pneg %p199
        $region30: #{tpu_custom_call.1} parent=11 // pred_check_branch
          %319 = sbr.rel (%p317) target = $region32
        $region31: #{tpu_custom_call.1} parent=11 // pred_region
          _
        $region32: #{tpu_custom_call.1} parent=11 // pred_fallthru
          _
        // Predicated region
        $region33: #{tpu_custom_call.1} parent=11 // pred_check
          %p320 = pneg %p220
        $region34: #{tpu_custom_call.1} parent=11 // pred_check_branch
          %322 = sbr.rel (%p320) target = $region36
        $region35: #{tpu_custom_call.1} parent=11 // pred_region
          _
        $region36: #{tpu_custom_call.1} parent=11 // pred_fallthru
          _
        // Predicated region
        $region37: #{tpu_custom_call.1} parent=11 // pred_check
          %p323 = pneg %p241
        $region38: #{tpu_custom_call.1} parent=11 // pred_check_branch
          %325 = sbr.rel (%p323) target = $region40
        $region39: #{tpu_custom_call.1} parent=11 // pred_region
          _
        $region40: #{tpu_custom_call.1} parent=11 // pred_fallthru
          _
        // Predicated region
        $region41: #{tpu_custom_call.1} parent=11 // pred_check
          %p326 = pneg %p262
        $region42: #{tpu_custom_call.1} parent=11 // pred_check_branch
          %328 = sbr.rel (%p326) target = $region44
        $region43: #{tpu_custom_call.1} parent=11 // pred_region
          _
        $region44: #{tpu_custom_call.1} parent=11 // pred_fallthru
          _
      $region12: #{tpu_custom_call.1} parent=5 // pred_fallthru
        _
      %p329 = scmp.lt.s32.totalorder %s19, 2
      // Predicated region
      $region45: #{tpu_custom_call.1} parent=5 // pred_check
        %p330 = pneg %p329
      $region46: #{tpu_custom_call.1} parent=5 // pred_check_branch
        %332 = sbr.rel (%p330) target = $region48
      $region47: #{tpu_custom_call.1} parent=5 // pred_region
        // Predicated region
        $region49: #{tpu_custom_call.1} parent=47 // pred_check
          %p333 = pneg %p60
        $region50: #{tpu_custom_call.1} parent=47 // pred_check_branch
          %335 = sbr.rel (%p333) target = $region52
        $region51: #{tpu_custom_call.1} parent=47 // pred_region
          %p336 = scmp.lt.s32.totalorder %s26, 1
          %s337 = scalar_select %p336, %s26, 1
          %p338 = scmp.lt.s32.totalorder %s27, 0
          %s339 = scalar_select %p338, %s27, 0
          %s340 = sadd.s32 %s339, %s337
          %s341 = smul.addr %s340, 4
          %s342 = scalar_lea.vmem %s0, %s341
        $region52: #{tpu_custom_call.1} parent=47 // pred_fallthru
          _
        // Predicated region
        $region53: #{tpu_custom_call.1} parent=47 // pred_check
          %p343 = pneg %p88
        $region54: #{tpu_custom_call.1} parent=47 // pred_check_branch
          %345 = sbr.rel (%p343) target = $region56
        $region55: #{tpu_custom_call.1} parent=47 // pred_region
          %p346 = scmp.lt.s32.totalorder %s26, 1
          %s347 = scalar_select %p346, %s26, 1
          %p348 = scmp.lt.s32.totalorder %s28, 0
          %s349 = scalar_select %p348, %s28, 0
          %s350 = sadd.s32 %s349, %s347
          %s351 = smul.addr %s350, 4
          %s352 = scalar_lea.vmem %s1, %s351
        $region56: #{tpu_custom_call.1} parent=47 // pred_fallthru
          _
      $region48: #{tpu_custom_call.1} parent=5 // pred_fallthru
        _
      %p353 = scmp.le.s32.totalorder 1, %s19
      %p354 = scmp.lt.s32.totalorder %s19, 3
      %p355 = pnand %p353, %p354
      %p356 = pneg %p355
      // Predicated region
      $region57: #{tpu_custom_call.1} parent=5 // pred_check
        _
      $region58: #{tpu_custom_call.1} parent=5 // pred_check_branch
        %358 = sbr.rel (%p355) target = $region60
      $region59: #{tpu_custom_call.1} parent=5 // pred_region
        %s359 = ssub.s32 %s19, 1
        %p360 = scmp.lt.s32.totalorder %s29, 1
        %s361 = scalar_select %p360, %s29, 1
        %p362 = scmp.lt.s32.totalorder %s30, 0
        %s363 = scalar_select %p362, %s30, 0
        %s364 = sadd.s32 %s363, %s361
        %s365 = smul.addr %s364, 4
        %s366 = scalar_lea.vmem %s0, %s365
        %p367 = pneg %p66
        %p368 = pneg %p63
        %p369 = scmp.lt.s32.totalorder %s29, 1
        %s370 = scalar_select %p369, %s29, 1
        %p371 = scmp.lt.s32.totalorder %s31, 0
        %s372 = scalar_select %p371, %s31, 0
        %s373 = sadd.s32 %s372, %s370
        %s374 = smul.addr %s373, 4
        %s375 = scalar_lea.vmem %s1, %s374
        %p376 = pneg %p94
        %p377 = pneg %p91
        %p378 = pneg %p115
        %p379 = pneg %p112
        %p380 = pneg %p136
        %p381 = pneg %p133
        %p382 = pneg %p157
        %p383 = pneg %p154
        %p384 = pneg %p178
        %p385 = pneg %p175
        %p386 = pneg %p199
        %p387 = pneg %p196
        %p388 = pneg %p220
        %p389 = pneg %p217
        %p390 = pneg %p241
        %p391 = pneg %p238
        %p392 = pneg %p262
        %p393 = pneg %p259
        %p394 = pneg %p290
        %p395 = pneg %p287
        %s396 = sand.u32 %s277, 1
        %s397 = scalar_lea.sflag [#allocation4], %s396
        %s398 = sand.u32 %s277, 1
        %s399 = smul.addr %s398, 4
        %s400 = scalar_lea.vmem [#allocation3], %s399
        %p401 = scmp.lt.s32.totalorder %s29, 1
        %s402 = scalar_select %p401, %s29, 1
        %p403 = scmp.lt.s32.totalorder %s30, 0
        %s404 = scalar_select %p403, %s30, 0
        %s405 = sadd.s32 %s404, %s402
        %s406 = smul.addr %s405, 4
        %s407 = scalar_lea.vmem %s0, %s406
        %p408 = scmp.lt.s32.totalorder %s29, 1
        %s409 = scalar_select %p408, %s29, 1
        %p410 = scmp.lt.s32.totalorder %s31, 0
        %s411 = scalar_select %p410, %s31, 0
        %s412 = sadd.s32 %s411, %s409
        %s413 = smul.addr %s412, 4
        %s414 = scalar_lea.vmem %s1, %s413
        %p415 = scmp.eq.s32.totalorder %s31, 0
        // Predicated region
        $region61: #{tpu_custom_call.1} parent=59 // pred_check
          %p416 = pneg %p415
        $region62: #{tpu_custom_call.1} parent=59 // pred_check_branch
          %418 = sbr.rel (%p416) target = $region64
        $region63: #{tpu_custom_call.1} parent=59 // pred_region
          %vm419 = vcmask 9216
          %420 = vst.msk [vmem:[#allocation2] sm:$0x3] %vm419, 0.0
        $region64: #{tpu_custom_call.1} parent=59 // pred_fallthru
          _
        %v421 = vld [vmem:[%s414] sm:$0xf]
        %v422 = vld [vmem:[%s2] sm:$0x3]
        %v423 = vld [vmem:[%s3] sm:$0x3]
        %425 = vset.pattern.permute.xlu0 0
        %426 = vperm.xlu0 %425, %v423
        %v427 = vpop.permute.xlu0 %426
        %vm429 = vcmask 31744
        %v431 = vsel %vm429, %v422, 0
        %vm433 = vcmask 1043456
        %v435 = vsel %vm433, %v421, 0
        %437 = vmatprep.subr.mxu0 0.0
        %438 = vmatpush1.msra.mxu0 %v435
        %439 = vmatprep.subr.mxu0 0.0
        %440 = vmatpush1.msra.mxu0 0.0
        %441 = vmatprep.subr.mxu0 0.0
        %442 = vmatpush1.msra.mxu0 0.0
        %443 = vmatprep.subr.mxu0 0.0
        %444 = vmatpush1.msra.mxu0 0.0
        %445 = vmatprep.subr.mxu0 0.0
        %446 = vmatpush1.msra.mxu0 0.0
        %447 = vmatprep.subr.mxu0 0.0
        %448 = vmatpush1.msra.mxu0 0.0
        %449 = vmatprep.subr.mxu0 0.0
        %450 = vmatpush1.msra.mxu0 0.0
        %451 = vmatprep.subr.mxu0 0.0
        %452 = vmatpush1.msra.mxu0 0.0
        %453 = vmatprep.subr.mxu0 0.0
        %454 = vmatpush1.msra.mxu0 0.0
        %455 = vmatprep.subr.mxu0 0.0
        %456 = vmatpush1.msra.mxu0 0.0
        %457 = vmatprep.subr.mxu0 0.0
        %458 = vmatpush1.msra.mxu0 0.0
        %459 = vmatprep.subr.mxu0 0.0
        %460 = vmatpush1.msra.mxu0 0.0
        %461 = vmatprep.subr.mxu0 0.0
        %462 = vmatpush1.msra.mxu0 0.0
        %463 = vmatprep.subr.mxu0 0.0
        %464 = vmatpush1.msra.mxu0 0.0
        %465 = vmatprep.subr.mxu0 0.0
        %466 = vmatpush1.msra.mxu0 0.0
        %467 = vmatprep.subr.mxu0 0.0
        %468 = vmatpush1.msra.mxu0 0.0
        %469 = vmatprep.subr.mxu0 0.0
        %470 = vmatpush1.msra.mxu0 0.0
        %471 = vmatprep.subr.mxu0 0.0
        %472 = vmatpush1.msra.mxu0 0.0
        %473 = vmatprep.subr.mxu0 0.0
        %474 = vmatpush1.msra.mxu0 0.0
        %475 = vmatprep.subr.mxu0 0.0
        %476 = vmatpush1.msra.mxu0 0.0
        %477 = vmatprep.subr.mxu0 0.0
        %478 = vmatpush1.msra.mxu0 0.0
        %479 = vmatprep.subr.mxu0 0.0
        %480 = vmatpush1.msra.mxu0 0.0
        %481 = vmatprep.subr.mxu0 0.0
        %482 = vmatpush1.msra.mxu0 0.0
        %483 = vmatprep.subr.mxu0 0.0
        %484 = vmatpush1.msra.mxu0 0.0
        %485 = vmatprep.subr.mxu0 0.0
        %486 = vmatpush1.msra.mxu0 0.0
        %487 = vmatprep.subr.mxu0 0.0
        %488 = vmatpush1.msra.mxu0 0.0
        %489 = vmatprep.subr.mxu0 0.0
        %490 = vmatpush1.msra.mxu0 0.0
        %491 = vmatprep.subr.mxu0 0.0
        %492 = vmatpush1.msra.mxu0 0.0
        %493 = vmatprep.subr.mxu0 0.0
        %494 = vmatpush1.msra.mxu0 0.0
        %495 = vmatprep.subr.mxu0 0.0
        %496 = vmatpush1.msra.mxu0 0.0
        %497 = vmatprep.subr.mxu0 0.0
        %498 = vmatpush1.msra.mxu0 0.0
        %499 = vmatprep.subr.mxu0 0.0
        %500 = vmatpush1.msra.mxu0 0.0
        %501 = vmatprep.mubr.f32.mxu0 0.0
        %502 = vmatmul.mubr.f32.gmra.mrb[0].mxu0 %v431
        %v503 = vpop.f32.mrb[0].mxu0
        %v504 = vadd.f32 %v427, %v503
        %v505 = vpop.f32.mrb[0].mxu0
        %506 = vdwg.mxu0
        %v507 = vld [vmem:[%s4] sm:$0x3]
        %v508 = vld [vmem:[%s5] sm:$0x3]
        %510 = vset.pattern.permute.xlu0 0
        %511 = vperm.xlu0 %510, %v508
        %v512 = vpop.permute.xlu0 %511
        %v515 = vsel %vm429, %v507, 0
        %517 = vmatprep.subr.mxu0 0.0
        %518 = vmatpush1.msra.mxu0 %v435
        %519 = vmatprep.subr.mxu0 0.0
        %520 = vmatpush1.msra.mxu0 0.0
        %521 = vmatprep.subr.mxu0 0.0
        %522 = vmatpush1.msra.mxu0 0.0
        %523 = vmatprep.subr.mxu0 0.0
        %524 = vmatpush1.msra.mxu0 0.0
        %525 = vmatprep.subr.mxu0 0.0
        %526 = vmatpush1.msra.mxu0 0.0
        %527 = vmatprep.subr.mxu0 0.0
        %528 = vmatpush1.msra.mxu0 0.0
        %529 = vmatprep.subr.mxu0 0.0
        %530 = vmatpush1.msra.mxu0 0.0
        %531 = vmatprep.subr.mxu0 0.0
        %532 = vmatpush1.msra.mxu0 0.0
        %533 = vmatprep.subr.mxu0 0.0
        %534 = vmatpush1.msra.mxu0 0.0
        %535 = vmatprep.subr.mxu0 0.0
        %536 = vmatpush1.msra.mxu0 0.0
        %537 = vmatprep.subr.mxu0 0.0
        %538 = vmatpush1.msra.mxu0 0.0
        %539 = vmatprep.subr.mxu0 0.0
        %540 = vmatpush1.msra.mxu0 0.0
        %541 = vmatprep.subr.mxu0 0.0
        %542 = vmatpush1.msra.mxu0 0.0
        %543 = vmatprep.subr.mxu0 0.0
        %544 = vmatpush1.msra.mxu0 0.0
        %545 = vmatprep.subr.mxu0 0.0
        %546 = vmatpush1.msra.mxu0 0.0
        %547 = vmatprep.subr.mxu0 0.0
        %548 = vmatpush1.msra.mxu0 0.0
        %549 = vmatprep.subr.mxu0 0.0
        %550 = vmatpush1.msra.mxu0 0.0
        %551 = vmatprep.subr.mxu0 0.0
        %552 = vmatpush1.msra.mxu0 0.0
        %553 = vmatprep.subr.mxu0 0.0
        %554 = vmatpush1.msra.mxu0 0.0
        %555 = vmatprep.subr.mxu0 0.0
        %556 = vmatpush1.msra.mxu0 0.0
        %557 = vmatprep.subr.mxu0 0.0
        %558 = vmatpush1.msra.mxu0 0.0
        %559 = vmatprep.subr.mxu0 0.0
        %560 = vmatpush1.msra.mxu0 0.0
        %561 = vmatprep.subr.mxu0 0.0
        %562 = vmatpush1.msra.mxu0 0.0
        %563 = vmatprep.subr.mxu0 0.0
        %564 = vmatpush1.msra.mxu0 0.0
        %565 = vmatprep.subr.mxu0 0.0
        %566 = vmatpush1.msra.mxu0 0.0
        %567 = vmatprep.subr.mxu0 0.0
        %568 = vmatpush1.msra.mxu0 0.0
        %569 = vmatprep.subr.mxu0 0.0
        %570 = vmatpush1.msra.mxu0 0.0
        %571 = vmatprep.subr.mxu0 0.0
        %572 = vmatpush1.msra.mxu0 0.0
        %573 = vmatprep.subr.mxu0 0.0
        %574 = vmatpush1.msra.mxu0 0.0
        %575 = vmatprep.subr.mxu0 0.0
        %576 = vmatpush1.msra.mxu0 0.0
        %577 = vmatprep.subr.mxu0 0.0
        %578 = vmatpush1.msra.mxu0 0.0
        %579 = vmatprep.subr.mxu0 0.0
        %580 = vmatpush1.msra.mxu0 0.0
        %581 = vmatprep.mubr.f32.mxu0 0.0
        %582 = vmatmul.mubr.f32.gmra.mrb[0].mxu0 %v515
        %v583 = vpop.f32.mrb[0].mxu0
        %v584 = vadd.f32 %v512, %v583
        %v585 = vpop.f32.mrb[0].mxu0
        %586 = vdwg.mxu0
        %v587 = vld [vmem:[#allocation2] sm:$0x3]
        %vm588 = vcmask 523264
        %v590 = vsel %vm588, %v504, 0
        %v593 = vsel %vm588, %v584, 0
        %595 = vmatprep.subr.mxu0 0.0
        %596 = vmatpush1.xpose.msra.mxu0 %v593
        %597 = vmatprep.subr.mxu0 0.0
        %598 = vmatpush1.xpose.msra.mxu0 0.0
        %599 = vmatprep.subr.mxu0 0.0
        %600 = vmatpush1.xpose.msra.mxu0 0.0
        %601 = vmatprep.subr.mxu0 0.0
        %602 = vmatpush1.xpose.msra.mxu0 0.0
        %603 = vmatprep.subr.mxu0 0.0
        %604 = vmatpush1.xpose.msra.mxu0 0.0
        %605 = vmatprep.subr.mxu0 0.0
        %606 = vmatpush1.xpose.msra.mxu0 0.0
        %607 = vmatprep.subr.mxu0 0.0
        %608 = vmatpush1.xpose.msra.mxu0 0.0
        %609 = vmatprep.subr.mxu0 0.0
        %610 = vmatpush1.xpose.msra.mxu0 0.0
        %611 = vmatprep.subr.mxu0 0.0
        %612 = vmatpush1.xpose.msra.mxu0 0.0
        %613 = vmatprep.subr.mxu0 0.0
        %614 = vmatpush1.xpose.msra.mxu0 0.0
        %615 = vmatprep.subr.mxu0 0.0
        %616 = vmatpush1.xpose.msra.mxu0 0.0
        %617 = vmatprep.subr.mxu0 0.0
        %618 = vmatpush1.xpose.msra.mxu0 0.0
        %619 = vmatprep.subr.mxu0 0.0
        %620 = vmatpush1.xpose.msra.mxu0 0.0
        %621 = vmatprep.subr.mxu0 0.0
        %622 = vmatpush1.xpose.msra.mxu0 0.0
        %623 = vmatprep.subr.mxu0 0.0
        %624 = vmatpush1.xpose.msra.mxu0 0.0
        %625 = vmatprep.subr.mxu0 0.0
        %626 = vmatpush1.xpose.msra.mxu0 0.0
        %627 = vmatprep.subr.mxu0 0.0
        %628 = vmatpush1.xpose.msra.mxu0 0.0
        %629 = vmatprep.subr.mxu0 0.0
        %630 = vmatpush1.xpose.msra.mxu0 0.0
        %631 = vmatprep.subr.mxu0 0.0
        %632 = vmatpush1.xpose.msra.mxu0 0.0
        %633 = vmatprep.subr.mxu0 0.0
        %634 = vmatpush1.xpose.msra.mxu0 0.0
        %635 = vmatprep.subr.mxu0 0.0
        %636 = vmatpush1.xpose.msra.mxu0 0.0
        %637 = vmatprep.subr.mxu0 0.0
        %638 = vmatpush1.xpose.msra.mxu0 0.0
        %639 = vmatprep.subr.mxu0 0.0
        %640 = vmatpush1.xpose.msra.mxu0 0.0
        %641 = vmatprep.subr.mxu0 0.0
        %642 = vmatpush1.xpose.msra.mxu0 0.0
        %643 = vmatprep.subr.mxu0 0.0
        %644 = vmatpush1.xpose.msra.mxu0 0.0
        %645 = vmatprep.subr.mxu0 0.0
        %646 = vmatpush1.xpose.msra.mxu0 0.0
        %647 = vmatprep.subr.mxu0 0.0
        %648 = vmatpush1.xpose.msra.mxu0 0.0
        %649 = vmatprep.subr.mxu0 0.0
        %650 = vmatpush1.xpose.msra.mxu0 0.0
        %651 = vmatprep.subr.mxu0 0.0
        %652 = vmatpush1.xpose.msra.mxu0 0.0
        %653 = vmatprep.subr.mxu0 0.0
        %654 = vmatpush1.xpose.msra.mxu0 0.0
        %655 = vmatprep.subr.mxu0 0.0
        %656 = vmatpush1.xpose.msra.mxu0 0.0
        %657 = vmatprep.subr.mxu0 0.0
        %658 = vmatpush1.xpose.msra.mxu0 0.0
        %659 = vmatprep.mubr.f32.mxu0 0.0
        %660 = vmatmul.mubr.f32.gmra.mrb[0].mxu0 %v590
        %v661 = vpop.f32.mrb[0].mxu0
        %v662 = vadd.f32 0.0, %v661
        %v663 = vpop.f32.mrb[0].mxu0
        %664 = vdwg.mxu0
        %v665 = vadd.f32 %v587, %v662
        %vm666 = vcmask 9216
        %667 = vst.msk [vmem:[#allocation2] sm:$0x3] %vm666, %v665
        // Predicated region
        $region65: #{tpu_custom_call.1} parent=59 // pred_check
          %p668 = pneg %p415
        $region66: #{tpu_custom_call.1} parent=59 // pred_check_branch
          %670 = sbr.rel (%p668) target = $region68
        $region67: #{tpu_custom_call.1} parent=59 // pred_region
          %v671 = vld [vmem:[%s407] sm:$0xf]
          %v672 = vld [vmem:[%s6] sm:$0x3]
          %v673 = vld [vmem:[%s7] sm:$0x3]
          %675 = vset.pattern.permute.xlu0 0
          %676 = vperm.xlu0 %675, %v673
          %v677 = vpop.permute.xlu0 %676
          %v680 = vsel %vm429, %v672, 0
          %v683 = vsel %vm433, %v671, 0
          %685 = vmatprep.subr.mxu0 0.0
          %686 = vmatpush1.msra.mxu0 %v683
          %687 = vmatprep.subr.mxu0 0.0
          %688 = vmatpush1.msra.mxu0 0.0
          %689 = vmatprep.subr.mxu0 0.0
          %690 = vmatpush1.msra.mxu0 0.0
          %691 = vmatprep.subr.mxu0 0.0
          %692 = vmatpush1.msra.mxu0 0.0
          %693 = vmatprep.subr.mxu0 0.0
          %694 = vmatpush1.msra.mxu0 0.0
          %695 = vmatprep.subr.mxu0 0.0
          %696 = vmatpush1.msra.mxu0 0.0
          %697 = vmatprep.subr.mxu0 0.0
          %698 = vmatpush1.msra.mxu0 0.0
          %699 = vmatprep.subr.mxu0 0.0
          %700 = vmatpush1.msra.mxu0 0.0
          %701 = vmatprep.subr.mxu0 0.0
          %702 = vmatpush1.msra.mxu0 0.0
          %703 = vmatprep.subr.mxu0 0.0
          %704 = vmatpush1.msra.mxu0 0.0
          %705 = vmatprep.subr.mxu0 0.0
          %706 = vmatpush1.msra.mxu0 0.0
          %707 = vmatprep.subr.mxu0 0.0
          %708 = vmatpush1.msra.mxu0 0.0
          %709 = vmatprep.subr.mxu0 0.0
          %710 = vmatpush1.msra.mxu0 0.0
          %711 = vmatprep.subr.mxu0 0.0
          %712 = vmatpush1.msra.mxu0 0.0
          %713 = vmatprep.subr.mxu0 0.0
          %714 = vmatpush1.msra.mxu0 0.0
          %715 = vmatprep.subr.mxu0 0.0
          %716 = vmatpush1.msra.mxu0 0.0
          %717 = vmatprep.subr.mxu0 0.0
          %718 = vmatpush1.msra.mxu0 0.0
          %719 = vmatprep.subr.mxu0 0.0
          %720 = vmatpush1.msra.mxu0 0.0
          %721 = vmatprep.subr.mxu0 0.0
          %722 = vmatpush1.msra.mxu0 0.0
          %723 = vmatprep.subr.mxu0 0.0
          %724 = vmatpush1.msra.mxu0 0.0
          %725 = vmatprep.subr.mxu0 0.0
          %726 = vmatpush1.msra.mxu0 0.0
          %727 = vmatprep.subr.mxu0 0.0
          %728 = vmatpush1.msra.mxu0 0.0
          %729 = vmatprep.subr.mxu0 0.0
          %730 = vmatpush1.msra.mxu0 0.0
          %731 = vmatprep.subr.mxu0 0.0
          %732 = vmatpush1.msra.mxu0 0.0
          %733 = vmatprep.subr.mxu0 0.0
          %734 = vmatpush1.msra.mxu0 0.0
          %735 = vmatprep.subr.mxu0 0.0
          %736 = vmatpush1.msra.mxu0 0.0
          %737 = vmatprep.subr.mxu0 0.0
          %738 = vmatpush1.msra.mxu0 0.0
          %739 = vmatprep.subr.mxu0 0.0
          %740 = vmatpush1.msra.mxu0 0.0
          %741 = vmatprep.subr.mxu0 0.0
          %742 = vmatpush1.msra.mxu0 0.0
          %743 = vmatprep.subr.mxu0 0.0
          %744 = vmatpush1.msra.mxu0 0.0
          %745 = vmatprep.subr.mxu0 0.0
          %746 = vmatpush1.msra.mxu0 0.0
          %747 = vmatprep.subr.mxu0 0.0
          %748 = vmatpush1.msra.mxu0 0.0
          %749 = vmatprep.mubr.f32.mxu0 0.0
          %750 = vmatmul.mubr.f32.gmra.mrb[0].mxu0 %v680
          %v751 = vpop.f32.mrb[0].mxu0
          %v752 = vadd.f32 %v677, %v751
          %v753 = vpop.f32.mrb[0].mxu0
          %754 = vdwg.mxu0
          %v755 = vld [vmem:[#allocation2] sm:$0x3]
          %v756 = vmul.f32 %v755, 0.015625
          %vm757 = vcmask 15360
          %v759 = vsel %vm757, %v756, 0
          %vm761 = vcmask 1041408
          %v763 = vsel %vm761, %v752, 0
          %765 = vmatprep.subr.mxu0 0.0
          %766 = vmatpush1.msra.mxu0 %v763
          %767 = vmatprep.subr.mxu0 0.0
          %768 = vmatpush1.msra.mxu0 0.0
          %769 = vmatprep.subr.mxu0 0.0
          %770 = vmatpush1.msra.mxu0 0.0
          %771 = vmatprep.subr.mxu0 0.0
          %772 = vmatpush1.msra.mxu0 0.0
          %773 = vmatprep.subr.mxu0 0.0
          %774 = vmatpush1.msra.mxu0 0.0
          %775 = vmatprep.subr.mxu0 0.0
          %776 = vmatpush1.msra.mxu0 0.0
          %777 = vmatprep.subr.mxu0 0.0
          %778 = vmatpush1.msra.mxu0 0.0
          %779 = vmatprep.subr.mxu0 0.0
          %780 = vmatpush1.msra.mxu0 0.0
          %781 = vmatprep.subr.mxu0 0.0
          %782 = vmatpush1.msra.mxu0 0.0
          %783 = vmatprep.subr.mxu0 0.0
          %784 = vmatpush1.msra.mxu0 0.0
          %785 = vmatprep.subr.mxu0 0.0
          %786 = vmatpush1.msra.mxu0 0.0
          %787 = vmatprep.subr.mxu0 0.0
          %788 = vmatpush1.msra.mxu0 0.0
          %789 = vmatprep.subr.mxu0 0.0
          %790 = vmatpush1.msra.mxu0 0.0
          %791 = vmatprep.subr.mxu0 0.0
          %792 = vmatpush1.msra.mxu0 0.0
          %793 = vmatprep.subr.mxu0 0.0
          %794 = vmatpush1.msra.mxu0 0.0
          %795 = vmatprep.subr.mxu0 0.0
          %796 = vmatpush1.msra.mxu0 0.0
          %797 = vmatprep.subr.mxu0 0.0
          %798 = vmatpush1.msra.mxu0 0.0
          %799 = vmatprep.subr.mxu0 0.0
          %800 = vmatpush1.msra.mxu0 0.0
          %801 = vmatprep.subr.mxu0 0.0
          %802 = vmatpush1.msra.mxu0 0.0
          %803 = vmatprep.subr.mxu0 0.0
          %804 = vmatpush1.msra.mxu0 0.0
          %805 = vmatprep.subr.mxu0 0.0
          %806 = vmatpush1.msra.mxu0 0.0
          %807 = vmatprep.subr.mxu0 0.0
          %808 = vmatpush1.msra.mxu0 0.0
          %809 = vmatprep.subr.mxu0 0.0
          %810 = vmatpush1.msra.mxu0 0.0
          %811 = vmatprep.subr.mxu0 0.0
          %812 = vmatpush1.msra.mxu0 0.0
          %813 = vmatprep.subr.mxu0 0.0
          %814 = vmatpush1.msra.mxu0 0.0
          %815 = vmatprep.subr.mxu0 0.0
          %816 = vmatpush1.msra.mxu0 0.0
          %817 = vmatprep.subr.mxu0 0.0
          %818 = vmatpush1.msra.mxu0 0.0
          %819 = vmatprep.subr.mxu0 0.0
          %820 = vmatpush1.msra.mxu0 0.0
          %821 = vmatprep.subr.mxu0 0.0
          %822 = vmatpush1.msra.mxu0 0.0
          %823 = vmatprep.subr.mxu0 0.0
          %824 = vmatpush1.msra.mxu0 0.0
          %825 = vmatprep.subr.mxu0 0.0
          %826 = vmatpush1.msra.mxu0 0.0
          %827 = vmatprep.subr.mxu0 0.0
          %828 = vmatpush1.msra.mxu0 0.0
          %829 = vmatprep.mubr.f32.mxu0 0.0
          %830 = vmatmul.mubr.f32.gmra.mrb[0].mxu0 %v759
          %v831 = vpop.f32.mrb[0].mxu0
          %v832 = vadd.f32 0.0, %v831
          %v833 = vpop.f32.mrb[0].mxu0
          %834 = vdwg.mxu0
          %v835 = vld [vmem:[%s8] sm:$0xf]
          %v836 = vld [vmem:[%s9] sm:$0xf]
          %838 = vset.pattern.permute.xlu0 0
          %839 = vperm.xlu0 %838, %v836
          %v840 = vpop.permute.xlu0 %839
          %v843 = vsel %vm757, %v835, 0
          %v846 = vsel %vm761, %v832, 0
          %848 = vmatprep.subr.mxu0 0.0
          %849 = vmatpush1.msra.mxu0 %v846
          %850 = vmatprep.subr.mxu0 0.0
          %851 = vmatpush1.msra.mxu0 0.0
          %852 = vmatprep.subr.mxu0 0.0
          %853 = vmatpush1.msra.mxu0 0.0
          %854 = vmatprep.subr.mxu0 0.0
          %855 = vmatpush1.msra.mxu0 0.0
          %856 = vmatprep.subr.mxu0 0.0
          %857 = vmatpush1.msra.mxu0 0.0
          %858 = vmatprep.subr.mxu0 0.0
          %859 = vmatpush1.msra.mxu0 0.0
          %860 = vmatprep.subr.mxu0 0.0
          %861 = vmatpush1.msra.mxu0 0.0
          %862 = vmatprep.subr.mxu0 0.0
          %863 = vmatpush1.msra.mxu0 0.0
          %864 = vmatprep.subr.mxu0 0.0
          %865 = vmatpush1.msra.mxu0 0.0
          %866 = vmatprep.subr.mxu0 0.0
          %867 = vmatpush1.msra.mxu0 0.0
          %868 = vmatprep.subr.mxu0 0.0
          %869 = vmatpush1.msra.mxu0 0.0
          %870 = vmatprep.subr.mxu0 0.0
          %871 = vmatpush1.msra.mxu0 0.0
          %872 = vmatprep.subr.mxu0 0.0
          %873 = vmatpush1.msra.mxu0 0.0
          %874 = vmatprep.subr.mxu0 0.0
          %875 = vmatpush1.msra.mxu0 0.0
          %876 = vmatprep.subr.mxu0 0.0
          %877 = vmatpush1.msra.mxu0 0.0
          %878 = vmatprep.subr.mxu0 0.0
          %879 = vmatpush1.msra.mxu0 0.0
          %880 = vmatprep.subr.mxu0 0.0
          %881 = vmatpush1.msra.mxu0 0.0
          %882 = vmatprep.subr.mxu0 0.0
          %883 = vmatpush1.msra.mxu0 0.0
          %884 = vmatprep.subr.mxu0 0.0
          %885 = vmatpush1.msra.mxu0 0.0
          %886 = vmatprep.subr.mxu0 0.0
          %887 = vmatpush1.msra.mxu0 0.0
          %888 = vmatprep.subr.mxu0 0.0
          %889 = vmatpush1.msra.mxu0 0.0
          %890 = vmatprep.subr.mxu0 0.0
          %891 = vmatpush1.msra.mxu0 0.0
          %892 = vmatprep.subr.mxu0 0.0
          %893 = vmatpush1.msra.mxu0 0.0
          %894 = vmatprep.subr.mxu0 0.0
          %895 = vmatpush1.msra.mxu0 0.0
          %896 = vmatprep.subr.mxu0 0.0
          %897 = vmatpush1.msra.mxu0 0.0
          %898 = vmatprep.subr.mxu0 0.0
          %899 = vmatpush1.msra.mxu0 0.0
          %900 = vmatprep.subr.mxu0 0.0
          %901 = vmatpush1.msra.mxu0 0.0
          %902 = vmatprep.subr.mxu0 0.0
          %903 = vmatpush1.msra.mxu0 0.0
          %904 = vmatprep.subr.mxu0 0.0
          %905 = vmatpush1.msra.mxu0 0.0
          %906 = vmatprep.subr.mxu0 0.0
          %907 = vmatpush1.msra.mxu0 0.0
          %908 = vmatprep.subr.mxu0 0.0
          %909 = vmatpush1.msra.mxu0 0.0
          %910 = vmatprep.subr.mxu0 0.0
          %911 = vmatpush1.msra.mxu0 0.0
          %912 = vmatprep.mubr.f32.mxu0 0.0
          %913 = vmatmul.mubr.f32.gmra.mrb[0].mxu0 %v843
          %v914 = vpop.f32.mrb[0].mxu0
          %v915 = vadd.f32 %v840, %v914
          %v916 = vpop.f32.mrb[0].mxu0
          %917 = vdwg.mxu0
          %v918 = vadd.f32 %v915, %v671
          %vm919 = vcmask 519168
          %920 = vst.msk [vmem:[%s400] sm:$0xf] %vm919, %v918
        $region68: #{tpu_custom_call.1} parent=59 // pred_fallthru
          _
        %s921 = sand.u32 %s277, 1
        %s922 = scalar_lea.sflag [#allocation4], %s921
        %s923 = sand.u32 %s277, 1
        %s924 = smul.addr %s923, 4
        %s925 = scalar_lea.vmem [#allocation3], %s924
        // Predicated region
        $region69: #{tpu_custom_call.1} parent=59 // pred_check
          %p926 = pneg %p287
        $region70: #{tpu_custom_call.1} parent=59 // pred_check_branch
          %928 = sbr.rel (%p926) target = $region72
        $region71: #{tpu_custom_call.1} parent=59 // pred_region
          %s930 = ssub.s32 64, 64
          %931 = vsyncadd %s922, %s930
          %s932 = sadd.s32 %s30, %s29
          %s933 = smul.addr %s932, 64
          %s934 = scalar_lea.hbm %s10, %s933
          %s936 = sshll.u32 %s925, 4
          %s937 = int_to_ptr.vmem [resolvable:$true] %s936
          %939 = dma.vmem_to_hbm [thread:$0]  %s937, 64, %s934, %s922
        $region72: #{tpu_custom_call.1} parent=59 // pred_fallthru
          _
      $region60: #{tpu_custom_call.1} parent=5 // pred_fallthru
        _
      %p940 = scmp.le.s32.totalorder 2, %s19
      // Predicated region
      $region73: #{tpu_custom_call.1} parent=5 // pred_check
        %p941 = pneg %p940
      $region74: #{tpu_custom_call.1} parent=5 // pred_check_branch
        %943 = sbr.rel (%p941) target = $region76
      $region75: #{tpu_custom_call.1} parent=5 // pred_region
        %s944 = ssub.s32 %s19, 2
        // Predicated region
        $region77: #{tpu_custom_call.1} parent=75 // pred_check
          %p945 = pneg %p293
        $region78: #{tpu_custom_call.1} parent=75 // pred_check_branch
          %947 = sbr.rel (%p945) target = $region80
        $region79: #{tpu_custom_call.1} parent=75 // pred_region
          %s948 = sand.u32 %s278, 1
          %s949 = scalar_lea.sflag [#allocation4], %s948
          %s950 = sand.u32 %s278, 1
          %s951 = smul.addr %s950, 4
          %s952 = scalar_lea.vmem [#allocation3], %s951
          %953 = dma.done %s949, 64
        $region80: #{tpu_custom_call.1} parent=75 // pred_fallthru
          _
      $region76: #{tpu_custom_call.1} parent=5 // pred_fallthru
        _
    $region6: #{tpu_custom_call.1} parent=1 // loop_footer
      %s23 = sadd.s32 1, %s19
    $region7: #{tpu_custom_call.1} parent=1 // loop_footer_branch
      %18 = sbr.rel target = $region3
    $region8: #{tpu_custom_call.1} parent=1 // loop_exit
      _
    %954 = vsyncpa [#allocation4], 1
    %s955 = scalar_lea.sflag [#allocation4], 1
    %956 = vsyncpa %s955, 1

</llo_original>
